<compile_context>
chip_gen: v7x
topology: tpu7x:2x2x1
jax: 0.10.0
libtpu: 0.0.40
codegen_flags: <defaults>
</compile_context>

<pallas_src>
import functools

import jax
import jax.numpy as jnp
from jax.experimental import pallas as pl
from jax.experimental.pallas import tpu as pltpu


# ----------------------------------------------------------------------------
# Tile selection helpers
# ----------------------------------------------------------------------------
def _round_up(x, m):
    return (x + m - 1) // m * m


def _sublane(itemsize):
    if itemsize >= 4:
        return 8
    if itemsize == 2:
        return 16
    return 32


def _pick_tile(dim, target, unit=128):
    """Largest multiple of `unit` that divides `dim` and is <= target.

    Falls back to the full dim only for small/odd dims (dim <= unit or not a
    multiple of unit) — never silently blows up to a huge full-K/full-N tile.
    """
    if dim <= unit or dim % unit != 0:
        return dim
    cap = min(target, dim)
    cap = max(cap - cap % unit, unit)
    for cand in range(cap, unit - 1, -unit):
        if dim % cand == 0:
            return cand
    return unit


def _pick_tm(M, target, sublane):
    """Balance M tiles instead of padding up to the next multiple of target."""
    if M <= target:
        return _round_up(M, sublane)
    n_tiles = -(-M // target)
    return _round_up(-(-M // n_tiles), sublane)


def _select_tiles(M, K, N, itemsize, tm_target=None, tn_target=None, tk_target=None):
    sublane = _sublane(itemsize)
    decode = M <= 256  # weight-streaming-bound regime
    if tm_target is None:
        tm_target = _round_up(M, sublane) if decode else 512
    if tk_target is None:
        tk_target = 1024 if decode else 512
    if tn_target is None:
        tn_target = 1024 if decode else 512

    tm = _pick_tm(M, tm_target, sublane)
    m_pad = _round_up(M, tm)
    tk = _pick_tile(K, tk_target)
    tn = _pick_tile(N, tn_target)
    # Keep >= 2 N tiles when the M axis has a single tile, so both TensorCores
    # (v7x megacore, "parallel" N axis) get work.
    if (m_pad // tm) == 1 and tn == N and N >= 256 and N % 128 == 0:
        tn = _pick_tile(N, N // 2)
    return tm, tk, tn, m_pad


def _compiler_params(tm, tk, tn, itemsize, n_weights, use_acc, weight_buffers):
    vmem_bytes = (
        2 * tm * tk * itemsize                       # activation double-buffer
        + n_weights * weight_buffers * tk * tn * itemsize  # weight buffers
        + n_weights * 2 * tm * tn * itemsize         # output double-buffers
        + (n_weights * tm * tn * 4 if use_acc else 0)  # f32 accumulators
    )
    # Cap at 48 MiB: leaves headroom under v7x's 64 MiB physical VMEM.
    vmem_limit = int(min(max(2 * vmem_bytes, 32 * 1024 * 1024), 48 * 1024 * 1024))
    return pltpu.CompilerParams(
        dimension_semantics=("parallel", "parallel", "arbitrary"),
        vmem_limit_bytes=vmem_limit,
    )


# ----------------------------------------------------------------------------
# Kernels
# ----------------------------------------------------------------------------
def _matmul_kernel_acc(x_ref, w_ref, o_ref, acc_ref, *, precision):
    @pl.when(pl.program_id(2) == 0)
    def _():
        acc_ref[...] = jnp.zeros_like(acc_ref)

    acc_ref[...] += jnp.dot(
        x_ref[...], w_ref[...],
        preferred_element_type=jnp.float32, precision=precision)

    @pl.when(pl.program_id(2) == pl.num_programs(2) - 1)
    def _():
        o_ref[...] = acc_ref[...].astype(o_ref.dtype)


def _matmul_kernel_single(x_ref, w_ref, o_ref, *, precision):
    # Single K step: no scratch accumulator, no zero-init, no RMW.
    o_ref[...] = jnp.dot(
        x_ref[...], w_ref[...],
        preferred_element_type=jnp.float32, precision=precision,
    ).astype(o_ref.dtype)


def _kv_kernel_acc(x_ref, wk_ref, wv_ref, ok_ref, ov_ref, acck_ref, accv_ref,
                   *, precision):
    @pl.when(pl.program_id(2) == 0)
    def _():
        acck_ref[...] = jnp.zeros_like(acck_ref)
        accv_ref[...] = jnp.zeros_like(accv_ref)

    x = x_ref[...]  # read the activation tile once, contract against both weights
    acck_ref[...] += jnp.dot(x, wk_ref[...],
                             preferred_element_type=jnp.float32, precision=precision)
    accv_ref[...] += jnp.dot(x, wv_ref[...],
                             preferred_element_type=jnp.float32, precision=precision)

    @pl.when(pl.program_id(2) == pl.num_programs(2) - 1)
    def _():
        ok_ref[...] = acck_ref[...].astype(ok_ref.dtype)
        ov_ref[...] = accv_ref[...].astype(ov_ref.dtype)


def _kv_kernel_single(x_ref, wk_ref, wv_ref, ok_ref, ov_ref, *, precision):
    x = x_ref[...]
    ok_ref[...] = jnp.dot(x, wk_ref[...],
                          preferred_element_type=jnp.float32,
                          precision=precision).astype(ok_ref.dtype)
    ov_ref[...] = jnp.dot(x, wv_ref[...],
                          preferred_element_type=jnp.float32,
                          precision=precision).astype(ov_ref.dtype)


# ----------------------------------------------------------------------------
# pallas_call wrappers
# ----------------------------------------------------------------------------
def _weight_spec(tk, tn, weight_buffers):
    if weight_buffers != 2:
        # Deeper buffering for DMA-exposed chips (e.g. v5e at ~0.8 TB/s HBM).
        return pl.BlockSpec((tk, tn), lambda i, j, k: (k, j),
                            pipeline_mode=pl.Buffered(weight_buffers))
    return pl.BlockSpec((tk, tn), lambda i, j, k: (k, j))


def _tiled_matmul(x, w, *, precision=None, tm_target=None, tn_target=None,
                  tk_target=None, weight_buffers=2):
    """y = x @ w (w already in [in, out] layout).  x: [M, K], w: [K, N]."""
    M, K = x.shape
    K2, N = w.shape
    assert K == K2
    itemsize = jnp.dtype(x.dtype).itemsize
    tm, tk, tn, m_pad = _select_tiles(M, K, N, itemsize,
                                      tm_target, tn_target, tk_target)
    if m_pad != M:
        x = jnp.pad(x, ((0, m_pad - M), (0, 0)))

    grid = (m_pad // tm, N // tn, K // tk)
    single_k = grid[2] == 1

    if single_k:
        kernel = functools.partial(_matmul_kernel_single, precision=precision)
        scratch = []
    else:
        kernel = functools.partial(_matmul_kernel_acc, precision=precision)
        scratch = [pltpu.VMEM((tm, tn), jnp.float32)]

    cost = pl.CostEstimate(
        flops=2 * m_pad * N * K,
        transcendentals=0,
        # Account for tile re-streaming across the grid (advisory only).
        bytes_accessed=(grid[1] * m_pad * K + grid[0] * K * N + m_pad * N) * itemsize,
    )

    y = pl.pallas_call(
        kernel,
        out_shape=jax.ShapeDtypeStruct((m_pad, N), x.dtype),
        grid_spec=pltpu.PrefetchScalarGridSpec(
            num_scalar_prefetch=0,
            grid=grid,
            in_specs=[
                pl.BlockSpec((tm, tk), lambda i, j, k: (i, k)),
                _weight_spec(tk, tn, weight_buffers),
            ],
            out_specs=pl.BlockSpec((tm, tn), lambda i, j, k: (i, j)),
            scratch_shapes=scratch,
        ),
        compiler_params=_compiler_params(tm, tk, tn, itemsize, 1,
                                         not single_k, weight_buffers),
        cost_estimate=cost,
    )(x, w)

    if m_pad != M:
        y = y[:M]
    return y


def _tiled_kv_matmul(x, wk, wv, *, precision=None, tm_target=None,
                     tn_target=None, tk_target=None, weight_buffers=2):
    """(x @ wk, x @ wv) in one pass over x; two separate [M, N] outputs."""
    M, K = x.shape
    K2, N = wk.shape
    assert K == K2 and wv.shape == wk.shape
    itemsize = jnp.dtype(x.dtype).itemsize
    tm, tk, tn, m_pad = _select_tiles(M, K, N, itemsize,
                                      tm_target, tn_target, tk_target)
    if m_pad != M:
        x = jnp.pad(x, ((0, m_pad - M), (0, 0)))

    grid = (m_pad // tm, N // tn, K // tk)
    single_k = grid[2] == 1

    if single_k:
        kernel = functools.partial(_kv_kernel_single, precision=precision)
        scratch = []
    else:
        kernel = functools.partial(_kv_kernel_acc, precision=precision)
        scratch = [pltpu.VMEM((tm, tn), jnp.float32),
                   pltpu.VMEM((tm, tn), jnp.float32)]

    cost = pl.CostEstimate(
        flops=2 * 2 * m_pad * N * K,
        transcendentals=0,
        bytes_accessed=(grid[1] * m_pad * K + 2 * grid[0] * K * N
                        + 2 * m_pad * N) * itemsize,
    )

    out_tile = pl.BlockSpec((tm, tn), lambda i, j, k: (i, j))
    k_out, v_out = pl.pallas_call(
        kernel,
        out_shape=(jax.ShapeDtypeStruct((m_pad, N), x.dtype),
                   jax.ShapeDtypeStruct((m_pad, N), x.dtype)),
        grid_spec=pltpu.PrefetchScalarGridSpec(
            num_scalar_prefetch=0,
            grid=grid,
            in_specs=[
                pl.BlockSpec((tm, tk), lambda i, j, k: (i, k)),
                _weight_spec(tk, tn, weight_buffers),
                _weight_spec(tk, tn, weight_buffers),
            ],
            out_specs=[out_tile, out_tile],
            scratch_shapes=scratch,
        ),
        compiler_params=_compiler_params(tm, tk, tn, itemsize, 2,
                                         not single_k, weight_buffers),
        cost_estimate=cost,
    )(x, wk, wv)

    if m_pad != M:
        k_out = k_out[:M]
        v_out = v_out[:M]
    return k_out, v_out


# ----------------------------------------------------------------------------
# Module-level API
# ----------------------------------------------------------------------------
def prepare_cross_attn_qkv_weights(wq, wk, wv):
    """One-time relayout of torch [out, in] Linear weights to [in, out].

    Call at parameter-init time and cache the results; the forward pass then
    avoids a per-call transpose/concat HBM round trip.
    """
    return jnp.asarray(wq.T), jnp.asarray(wk.T), jnp.asarray(wv.T)


def cross_attn_qkv_proj(hidden_states, memory_states, wq_t, wk_t, wv_t,
                        num_kv_head=32, num_query_head=32, head_dim=128,
                        precision=None, **tile_kwargs):
    """Forward pass of CrossAttnQKVProj with pre-transposed ([in, out]) weights."""
    B, Sq, E = hidden_states.shape
    Bm, Sm, Em = memory_states.shape
    assert Em == E and Bm == B
    assert num_query_head * head_dim == E
    assert num_kv_head * head_dim == E

    # Flatten (batch, seq) into a single lane-dense M axis for the matmuls.
    h2 = hidden_states.reshape(B * Sq, E)
    m2 = memory_states.reshape(B * Sm, E)

    q2 = _tiled_matmul(h2, wq_t, precision=precision, **tile_kwargs)
    # K and V in one pass over memory_states, written as two separate outputs
    # (no post-kernel slice copy).
    k2, v2 = _tiled_kv_matmul(m2, wk_t, wv_t, precision=precision, **tile_kwargs)

    # unflatten(-1, (heads, head_dim)) + transpose(1, 2): cheap XLA layout glue
    # kept outside the kernel so kernel stores stay lane-dense at width E.
    # Consumers that accept [B, S, H, D] directly can skip the transpose.
    query = q2.reshape(B, Sq, num_query_head, head_dim).transpose(0, 2, 1, 3)
    key = k2.reshape(B, Sm, num_kv_head, head_dim).transpose(0, 2, 1, 3)
    value = v2.reshape(B, Sm, num_kv_head, head_dim).transpose(0, 2, 1, 3)
    return query, key, value


# ----------------------------------------------------------------------------
# Self-test
# ----------------------------------------------------------------------------
if __name__ == "__main__":
    # Small, self-consistent shapes: embed_dim = num_heads * head_dim.
    B, Sq, Sm = 2, 8, 16
    EMBED_DIM = 256
    NUM_QUERY_HEAD = 2
    NUM_KV_HEAD = 2
    HEAD_DIM = 128

    key0 = jax.random.PRNGKey(0)
    k_h, k_m, k_wq, k_wk, k_wv = jax.random.split(key0, 5)

    hidden_states = jax.random.normal(k_h, (B, Sq, EMBED_DIM), dtype=jnp.float32)
    memory_states = jax.random.normal(k_m, (B, Sm, EMBED_DIM), dtype=jnp.float32)

    # Deterministic synthetic Linear weights, torch layout [out, in].
    scale = 1.0 / (EMBED_DIM ** 0.5)
    wq = jax.random.normal(k_wq, (EMBED_DIM, EMBED_DIM), dtype=jnp.float32) * scale
    wk = jax.random.normal(k_wk, (EMBED_DIM, EMBED_DIM), dtype=jnp.float32) * scale
    wv = jax.random.normal(k_wv, (EMBED_DIM, EMBED_DIM), dtype=jnp.float32) * scale

    # One-time weight relayout (parameter-init time).
    wq_t, wk_t, wv_t = prepare_cross_attn_qkv_weights(wq, wk, wv)
    jax.block_until_ready((wq_t, wk_t, wv_t))

    hi = jax.lax.Precision.HIGHEST

    # Exact f32 reference of the torch forward.
    q_ref = jnp.matmul(hidden_states, wq.T, precision=hi) \
        .reshape(B, Sq, NUM_QUERY_HEAD, HEAD_DIM).transpose(0, 2, 1, 3)
    k_ref = jnp.matmul(memory_states, wk.T, precision=hi) \
        .reshape(B, Sm, NUM_KV_HEAD, HEAD_DIM).transpose(0, 2, 1, 3)
    v_ref = jnp.matmul(memory_states, wv.T, precision=hi) \
        .reshape(B, Sm, NUM_KV_HEAD, HEAD_DIM).transpose(0, 2, 1, 3)

    # Run 1: production path — default MXU precision (bf16 passes), default
    # decode-regime tile policy (single K step, grid_n >= 2).
    query, key, value = cross_attn_qkv_proj(
        hidden_states, memory_states, wq_t, wk_t, wv_t,
        num_kv_head=NUM_KV_HEAD, num_query_head=NUM_QUERY_HEAD, head_dim=HEAD_DIM,
    )
    jax.block_until_ready((query, key, value))
    assert query.shape == (B, NUM_QUERY_HEAD, Sq, HEAD_DIM)
    assert key.shape == (B, NUM_KV_HEAD, Sm, HEAD_DIM)
    assert value.shape == (B, NUM_KV_HEAD, Sm, HEAD_DIM)
    # Default precision uses bf16 MXU passes -> loose tolerance.
    assert jnp.allclose(query, q_ref, atol=2e-2, rtol=2e-2)
    assert jnp.allclose(key, k_ref, atol=2e-2, rtol=2e-2)
    assert jnp.allclose(value, v_ref, atol=2e-2, rtol=2e-2)

    # Run 2: HIGHEST precision + forced small tiles to exercise the K-reduction
    # accumulator path (grid_k = 2), multi-M and multi-N grids.
    query2, key2, value2 = cross_attn_qkv_proj(
        hidden_states, memory_states, wq_t, wk_t, wv_t,
        num_kv_head=NUM_KV_HEAD, num_query_head=NUM_QUERY_HEAD, head_dim=HEAD_DIM,
        precision=hi, tm_target=16, tn_target=128, tk_target=128,
    )
    jax.block_until_ready((query2, key2, value2))
    assert jnp.allclose(query2, q_ref, atol=1e-4, rtol=1e-4)
    assert jnp.allclose(key2, k_ref, atol=1e-4, rtol=1e-4)
    assert jnp.allclose(value2, v_ref, atol=1e-4, rtol=1e-4)

    print("KERNEL_OK")
</pallas_src>

<mosaic_0001>
module attributes {stable_mosaic.version = 11 : i64} {
  func.func @_matmul_kernel_single(%arg0: i32, %arg1: i32, %arg2: i32, %arg3: memref<16x256xf32, #tpu.memory_space<vmem>>, %arg4: memref<256x128xf32, #tpu.memory_space<vmem>>, %arg5: memref<16x128xf32, #tpu.memory_space<vmem>>) attributes {dimension_semantics = [#tpu.dimension_semantics<parallel>, #tpu.dimension_semantics<parallel>, #tpu.dimension_semantics<arbitrary>], iteration_bounds = array<i64: 1, 2, 1>, scalar_prefetch = 0 : i64, scratch_operands = 0 : i64, tpu.core_type = #tpu.core_type<tc>, window_params = [{transform_indices = @transform_0, window_bounds = array<i64: 16, 256>}, {transform_indices = @transform_1, window_bounds = array<i64: 256, 128>}, {transform_indices = @transform_2, window_bounds = array<i64: 16, 128>}]} {
    %c0 = arith.constant 0 : index
    %c0_0 = arith.constant 0 : index
    %0 = vector.load %arg3[%c0, %c0_0] : memref<16x256xf32, #tpu.memory_space<vmem>>, vector<16x256xf32>
    %c0_1 = arith.constant 0 : index
    %c0_2 = arith.constant 0 : index
    %1 = vector.load %arg4[%c0_1, %c0_2] : memref<256x128xf32, #tpu.memory_space<vmem>>, vector<256x128xf32>
    %cst = arith.constant dense<0.000000e+00> : vector<16x128xf32>
    %2 = tpu.matmul %0, %1, %cst {dimension_numbers = #tpu.dot_dimension_numbers<[1], [0], [0], [1], [0, 0, 1, 1], [], []>} : vector<16x256xf32>, vector<256x128xf32>, vector<16x128xf32> -> vector<16x128xf32>
    %c0_3 = arith.constant 0 : index
    %c0_4 = arith.constant 0 : index
    %3 = vector.load %arg5[%c0_3, %c0_4] : memref<16x128xf32, #tpu.memory_space<vmem>>, vector<16x128xf32>
    tpu.vector_store %arg5[%c0_3, %c0_4], %2 {strides = array<i32>} : memref<16x128xf32, #tpu.memory_space<vmem>>, vector<16x128xf32>,
    return
  }
  func.func @transform_0(%arg0: i32, %arg1: i32, %arg2: i32) -> (i32, i32) {
    %c0_i32 = arith.constant 0 : i32
    return %arg0, %arg2 : i32, i32
  }
  func.func @transform_1(%arg0: i32, %arg1: i32, %arg2: i32) -> (i32, i32) {
    %c0_i32 = arith.constant 0 : i32
    return %arg2, %arg1 : i32, i32
  }
  func.func @transform_2(%arg0: i32, %arg1: i32, %arg2: i32) -> (i32, i32) {
    %c0_i32 = arith.constant 0 : i32
    return %arg0, %arg1 : i32, i32
  }
}

</mosaic_0001>

<llo_original>
// kernel: tpu_custom_call.1
$region0: #{tpu_custom_call.1}
  #allocation0 [shape = 'u32[]', space=smem, size = 0x4, offset = 0x4, fixed_abs, tag = 'smem constant byte address 0x4 - core index']
  #allocation1 [shape = 'u32[144,128]{1,0:T(1,128)}', space=vmem, size = 0x12000, scoped, tag = 'internal scratch']
  %s0 = inlined_call_operand.hbm [shape: f32[16,256], index: 0, kind: input, shape index: {}]
  %s1 = inlined_call_operand.hbm [shape: f32[256,256], index: 1, kind: input, shape index: {}]
  %s2 = inlined_call_operand.hbm [shape: f32[16,256], index: 2, kind: output, shape index: {}]
  %s3 = sld [smem:[#allocation0]]
  $region49: #{tpu_custom_call.1} parent=0
    _
  %s5 = ssub.s32 1, %s3
  %s6 = scalar_select 0, %s5, %s3
  $region1: #{tpu_custom_call.1} parent=0
    #allocation2 [shape = 'u8[16384]{0}', space=vmem, size = 0x4000, scoped, tag = 'input window, operand 0, single buffered']
    #allocation3 [shape = 's32[2]{0}', space=sflag, size = 0x8, scoped, tag = 'scoped memory for tpu_custom_call.1']
    #allocation4 [shape = 's32[2]{0}', space=sflag, size = 0x8, scoped, tag = 'scoped memory for tpu_custom_call.1']
    #allocation5 [shape = 'u8[262144]{0}', space=vmem, size = 0x40000, scoped, tag = 'input window, operand 1']
    #allocation6 [shape = 's32[2]{0}', space=sflag, size = 0x8, scoped, tag = 'scoped memory for tpu_custom_call.1']
    #allocation7 [shape = 'u8[16384]{0}', space=vmem, size = 0x4000, scoped, tag = 'output window, operand 0']
    %7 = vsyncpa [#allocation3], 0
    %8 = vsyncpa [#allocation6], 0
    %s9 = scalar_lea.sflag [#allocation6], 1
    %10 = vsyncpa %s9, 0
    %11 = vsyncpa [#allocation4], 0
    %s12 = scalar_lea.sflag [#allocation4], 1
    %13 = vsyncpa %s12, 0
    loop: start=0, step=1, limit=4
    $region2: #{tpu_custom_call.1} parent=1 // loop_pre_header
      _
    $region3: #{tpu_custom_call.1} parent=1 // loop_header
      %s15 = sphi 0, %s19
      %p16 = scmp.ge.s32.totalorder %s15, 4
      %s22 = sphi 0, %s41
      %s23 = sphi 0, %s37
      %s24 = sphi 0, %s33
      %s25 = sphi 0, %s22
      %s26 = sphi 0, %s23
      %s27 = sphi 0, %s24
      %s28 = sphi 0, %s25
      %s29 = sphi 0, %s26
      %s30 = sphi 0, %s27
      %s46 = sphi 0, %s48
      %s49 = sphi 0, %s46
      %s50 = sphi 0, %s49
      %s66 = sphi 0, %s50
      %s74 = sphi 0, %s76
      %s77 = sphi 0, %s74
      %s78 = sphi 0, %s77
      %s94 = sphi 0, %s78
      %s102 = sphi 0, %s104
      %s105 = sphi 0, %s102
      %s106 = sphi 0, %s105
      %s122 = sphi 0, %s106
    $region4: #{tpu_custom_call.1} parent=1 // loop_header_branch
      %18 = sbr.rel (%p16) target = $region8
    $region5: #{tpu_custom_call.1} parent=1 // loop_body
      %s20 = ssub.s32 %s15, 1
      %s21 = ssub.s32 %s15, 2
      %s31 = sadd.s32 1, %s24
      %p32 = scmp.ge.s32.totalorder %s31, 1
      %s33 = scalar_select %p32, 0, %s31
      %s34 = sadd.s32 1, %s23
      %s35 = scalar_select %p32, %s34, %s23
      %p36 = scmp.ge.s32.totalorder %s35, 2
      %s37 = scalar_select %p36, 0, %s35
      %s38 = sadd.s32 1, %s22
      %s39 = scalar_select %p36, %s38, %s22
      %p40 = scmp.ge.s32.totalorder %s39, 1
      %s41 = scalar_select %p40, 0, %s39
      %s42 = ssub.s32 %s22, %s41
      %s43 = ssub.s32 %s24, %s33
      %s44 = sor.u32 %s42, %s43
      %p45 = scmp.eq.s32.totalorder %s44, 0
      %s47 = sadd.s32 %s46, 1
      %s48 = scalar_select %p45, %s46, %s47
      %p51 = pneg %p45
      %p52 = scmp.eq.s32.totalorder %s15, 1
      %p53 = por %p51, %p52
      %p54 = scmp.ne.s32.totalorder %s46, %s49
      %p55 = scmp.eq.s32.totalorder %s15, 0
      %p56 = por %p54, %p55
      %p57 = scmp.ne.s32.totalorder %s46, %s49
      %p58 = scmp.eq.s32.totalorder %s20, 1
      %p59 = por %p57, %p58
      %p60 = scmp.ne.s32.totalorder %s49, %s50
      %p61 = scmp.eq.s32.totalorder %s20, 0
      %p62 = por %p60, %p61
      %p63 = scmp.ne.s32.totalorder %s49, %s50
      %p64 = scmp.eq.s32.totalorder %s21, 1
      %p65 = por %p63, %p64
      %p67 = scmp.ne.s32.totalorder %s50, %s66
      %p68 = scmp.eq.s32.totalorder %s21, 0
      %p69 = por %p67, %p68
      %s70 = ssub.s32 %s24, %s33
      %s71 = ssub.s32 %s23, %s37
      %s72 = sor.u32 %s70, %s71
      %p73 = scmp.eq.s32.totalorder %s72, 0
      %s75 = sadd.s32 %s74, 1
      %s76 = scalar_select %p73, %s74, %s75
      %p79 = pneg %p73
      %p80 = scmp.eq.s32.totalorder %s15, 1
      %p81 = por %p79, %p80
      %p82 = scmp.ne.s32.totalorder %s74, %s77
      %p83 = scmp.eq.s32.totalorder %s15, 0
      %p84 = por %p82, %p83
      %p85 = scmp.ne.s32.totalorder %s74, %s77
      %p86 = scmp.eq.s32.totalorder %s20, 1
      %p87 = por %p85, %p86
      %p88 = scmp.ne.s32.totalorder %s77, %s78
      %p89 = scmp.eq.s32.totalorder %s20, 0
      %p90 = por %p88, %p89
      %p91 = scmp.ne.s32.totalorder %s77, %s78
      %p92 = scmp.eq.s32.totalorder %s21, 1
      %p93 = por %p91, %p92
      %p95 = scmp.ne.s32.totalorder %s78, %s94
      %p96 = scmp.eq.s32.totalorder %s21, 0
      %p97 = por %p95, %p96
      %s98 = ssub.s32 %s22, %s41
      %s99 = ssub.s32 %s23, %s37
      %s100 = sor.u32 %s98, %s99
      %p101 = scmp.eq.s32.totalorder %s100, 0
      %s103 = sadd.s32 %s102, 1
      %s104 = scalar_select %p101, %s102, %s103
      %p107 = pneg %p101
      %p108 = scmp.eq.s32.totalorder %s15, 1
      %p109 = por %p107, %p108
      %p110 = scmp.ne.s32.totalorder %s102, %s105
      %p111 = scmp.eq.s32.totalorder %s15, 0
      %p112 = por %p110, %p111
      %p113 = scmp.ne.s32.totalorder %s102, %s105
      %p114 = scmp.eq.s32.totalorder %s20, 1
      %p115 = por %p113, %p114
      %p116 = scmp.ne.s32.totalorder %s105, %s106
      %p117 = scmp.eq.s32.totalorder %s20, 0
      %p118 = por %p116, %p117
      %p119 = scmp.ne.s32.totalorder %s105, %s106
      %p120 = scmp.eq.s32.totalorder %s21, 1
      %p121 = por %p119, %p120
      %p123 = scmp.ne.s32.totalorder %s106, %s122
      %p124 = scmp.eq.s32.totalorder %s21, 0
      %p125 = por %p123, %p124
      %p126 = scmp.le.s32.totalorder 1, %s15
      %p127 = scmp.lt.s32.totalorder %s15, 3
      %p128 = pnand %p126, %p127
      %p129 = pneg %p128
      // Predicated region
      $region9: #{tpu_custom_call.1} parent=5 // pred_check
        _
      $region10: #{tpu_custom_call.1} parent=5 // pred_check_branch
        %131 = sbr.rel (%p128) target = $region12
      $region11: #{tpu_custom_call.1} parent=5 // pred_region
        %s132 = ssub.s32 %s15, 1
        // Predicated region
        $region13: #{tpu_custom_call.1} parent=11 // pred_check
          %p133 = pneg %p62
        $region14: #{tpu_custom_call.1} parent=11 // pred_check_branch
          %135 = sbr.rel (%p133) target = $region16
        $region15: #{tpu_custom_call.1} parent=11 // pred_region
          %s136 = smul.u32 2, %s25
          %s137 = smul.u32 2, %s27
          %s139 = ssub.s32 512, 512
          %140 = vsyncadd [#allocation3], %s139
          %s141 = smul.addr %s136, 2
          %s142 = sadd.s32 %s137, %s141
          %s143 = smul.addr %s142, 128
          %s144 = scalar_lea.hbm %s0, %s143
          %s145 = sshll.u32 [#allocation2], 4
          %s146 = int_to_ptr.vmem [resolvable:$true] %s145
          %151 = dma.hbm_to_vmem [thread:$0]  %s144, 512, %s146, [#allocation3], 256, 256, 16
        $region16: #{tpu_custom_call.1} parent=11 // pred_fallthru
          _
      $region12: #{tpu_custom_call.1} parent=5 // pred_fallthru
        _
      %p152 = scmp.lt.s32.totalorder %s15, 2
      // Predicated region
      $region17: #{tpu_custom_call.1} parent=5 // pred_check
        %p153 = pneg %p152
      $region18: #{tpu_custom_call.1} parent=5 // pred_check_branch
        %155 = sbr.rel (%p153) target = $region20
      $region19: #{tpu_custom_call.1} parent=5 // pred_region
        // Predicated region
        $region21: #{tpu_custom_call.1} parent=19 // pred_check
          %p156 = pneg %p84
        $region22: #{tpu_custom_call.1} parent=19 // pred_check_branch
          %158 = sbr.rel (%p156) target = $region24
        $region23: #{tpu_custom_call.1} parent=19 // pred_region
          %s159 = sand.u32 %s74, 1
          %s160 = scalar_lea.sflag [#allocation6], %s159
          %s161 = sand.u32 %s74, 1
          %s162 = smul.addr %s161, 256
          %s163 = scalar_lea.vmem [#allocation5], %s162
          %s164 = smul.u32 32, %s24
          %s166 = ssub.s32 4096, 4096
          %167 = vsyncadd %s160, %s166
          %s168 = smul.addr %s164, 2
          %s169 = sadd.s32 %s23, %s168
          %s170 = smul.addr %s169, 128
          %s171 = scalar_lea.hbm %s1, %s170
          %s172 = sshll.u32 %s163, 4
          %s173 = int_to_ptr.vmem [resolvable:$true] %s172
          %178 = dma.hbm_to_vmem [thread:$0]  %s171, 4096, %s173, %s160, 256, 128, 8
        $region24: #{tpu_custom_call.1} parent=19 // pred_fallthru
          _
      $region20: #{tpu_custom_call.1} parent=5 // pred_fallthru
        _
      %p179 = scmp.le.s32.totalorder 1, %s15
      %p180 = scmp.lt.s32.totalorder %s15, 3
      %p181 = pnand %p179, %p180
      %p182 = pneg %p181
      // Predicated region
      $region25: #{tpu_custom_call.1} parent=5 // pred_check
        _
      $region26: #{tpu_custom_call.1} parent=5 // pred_check_branch
        %184 = sbr.rel (%p181) target = $region28
      $region27: #{tpu_custom_call.1} parent=5 // pred_region
        %s185 = ssub.s32 %s15, 1
        // Predicated region
        $region29: #{tpu_custom_call.1} parent=27 // pred_check
          %p186 = pneg %p62
        $region30: #{tpu_custom_call.1} parent=27 // pred_check_branch
          %188 = sbr.rel (%p186) target = $region32
        $region31: #{tpu_custom_call.1} parent=27 // pred_region
          %189 = dma.done [#allocation3], 512
        $region32: #{tpu_custom_call.1} parent=27 // pred_fallthru
          _
        %s190 = sand.u32 %s77, 1
        %s191 = scalar_lea.sflag [#allocation6], %s190
        %s192 = sand.u32 %s77, 1
        %s193 = smul.addr %s192, 256
        %s194 = scalar_lea.vmem [#allocation5], %s193
        // Predicated region
        $region33: #{tpu_custom_call.1} parent=27 // pred_check
          %p195 = pneg %p90
        $region34: #{tpu_custom_call.1} parent=27 // pred_check_branch
          %197 = sbr.rel (%p195) target = $region36
        $region35: #{tpu_custom_call.1} parent=27 // pred_region
          %198 = dma.done %s191, 4096
        $region36: #{tpu_custom_call.1} parent=27 // pred_fallthru
          _
        %p199 = pneg %p62
        %p200 = pneg %p59
        %s201 = sand.u32 %s77, 1
        %s202 = scalar_lea.sflag [#allocation6], %s201
        %s203 = sand.u32 %s77, 1
        %s204 = smul.addr %s203, 256
        %s205 = scalar_lea.vmem [#allocation5], %s204
        %p206 = pneg %p90
        %p207 = pneg %p87
        %p208 = pneg %p118
        %p209 = pneg %p115
        %s210 = sand.u32 %s105, 1
        %s211 = scalar_lea.sflag [#allocation4], %s210
        %s212 = sand.u32 %s105, 1
        %s213 = smul.addr %s212, 16
        %s214 = scalar_lea.vmem [#allocation7], %s213
        %s215 = smul.u32 2, %s25
        %s216 = smul.u32 2, %s27
        %s217 = smul.u32 32, %s27
        %s218 = smul.u32 2, %s25
        %v219 = vld [vmem:[#allocation2] sm:$0xff]
        %v220 = vld [vmem:[#allocation2 + $0x8] sm:$0xff]
        %v221 = vld [vmem:[#allocation2 + $0x10] sm:$0xff]
        %v222 = vld [vmem:[#allocation2 + $0x18] sm:$0xff]
        %v223 = vld [vmem:[%s194] sm:$0xff]
        %v224 = vld [vmem:[%s194 + $0x8] sm:$0xff]
        %v225 = vld [vmem:[%s194 + $0x10] sm:$0xff]
        %v226 = vld [vmem:[%s194 + $0x18] sm:$0xff]
        %v227 = vld [vmem:[%s194 + $0x20] sm:$0xff]
        %v228 = vld [vmem:[%s194 + $0x28] sm:$0xff]
        %v229 = vld [vmem:[%s194 + $0x30] sm:$0xff]
        %v230 = vld [vmem:[%s194 + $0x38] sm:$0xff]
        %v231 = vld [vmem:[%s194 + $0x40] sm:$0xff]
        %v232 = vld [vmem:[%s194 + $0x48] sm:$0xff]
        %v233 = vld [vmem:[%s194 + $0x50] sm:$0xff]
        %v234 = vld [vmem:[%s194 + $0x58] sm:$0xff]
        %v235 = vld [vmem:[%s194 + $0x60] sm:$0xff]
        %v236 = vld [vmem:[%s194 + $0x68] sm:$0xff]
        %v237 = vld [vmem:[%s194 + $0x70] sm:$0xff]
        %v238 = vld [vmem:[%s194 + $0x78] sm:$0xff]
        %v239 = vld [vmem:[%s194 + $0x80] sm:$0xff]
        %v240 = vld [vmem:[%s194 + $0x88] sm:$0xff]
        %v241 = vld [vmem:[%s194 + $0x90] sm:$0xff]
        %v242 = vld [vmem:[%s194 + $0x98] sm:$0xff]
        %v243 = vld [vmem:[%s194 + $0xa0] sm:$0xff]
        %v244 = vld [vmem:[%s194 + $0xa8] sm:$0xff]
        %v245 = vld [vmem:[%s194 + $0xb0] sm:$0xff]
        %v246 = vld [vmem:[%s194 + $0xb8] sm:$0xff]
        %v247 = vld [vmem:[%s194 + $0xc0] sm:$0xff]
        %v248 = vld [vmem:[%s194 + $0xc8] sm:$0xff]
        %v249 = vld [vmem:[%s194 + $0xd0] sm:$0xff]
        %v250 = vld [vmem:[%s194 + $0xd8] sm:$0xff]
        %v251 = vld [vmem:[%s194 + $0xe0] sm:$0xff]
        %v252 = vld [vmem:[%s194 + $0xe8] sm:$0xff]
        %v253 = vld [vmem:[%s194 + $0xf0] sm:$0xff]
        %v254 = vld [vmem:[%s194 + $0xf8] sm:$0xff]
        %255 = vmatprep.subr.mxu0 0.0
        %256 = vmatpush1.msra.mxu0 %v223
        %257 = vmatprep.subr.mxu0 0.0
        %258 = vmatpush1.msra.mxu0 %v224
        %259 = vmatprep.subr.mxu0 0.0
        %260 = vmatpush1.msra.mxu0 %v225
        %261 = vmatprep.subr.mxu0 0.0
        %262 = vmatpush1.msra.mxu0 %v226
        %263 = vmatprep.subr.mxu0 0.0
        %264 = vmatpush1.msra.mxu0 %v227
        %265 = vmatprep.subr.mxu0 0.0
        %266 = vmatpush1.msra.mxu0 %v228
        %267 = vmatprep.subr.mxu0 0.0
        %268 = vmatpush1.msra.mxu0 %v229
        %269 = vmatprep.subr.mxu0 0.0
        %270 = vmatpush1.msra.mxu0 %v230
        %271 = vmatprep.subr.mxu0 0.0
        %272 = vmatpush1.msra.mxu0 %v231
        %273 = vmatprep.subr.mxu0 0.0
        %274 = vmatpush1.msra.mxu0 %v232
        %275 = vmatprep.subr.mxu0 0.0
        %276 = vmatpush1.msra.mxu0 %v233
        %277 = vmatprep.subr.mxu0 0.0
        %278 = vmatpush1.msra.mxu0 %v234
        %279 = vmatprep.subr.mxu0 0.0
        %280 = vmatpush1.msra.mxu0 %v235
        %281 = vmatprep.subr.mxu0 0.0
        %282 = vmatpush1.msra.mxu0 %v236
        %283 = vmatprep.subr.mxu0 0.0
        %284 = vmatpush1.msra.mxu0 %v237
        %285 = vmatprep.subr.mxu0 0.0
        %286 = vmatpush1.msra.mxu0 %v238
        %287 = vmatprep.subr.mxu0 0.0
        %288 = vmatpush1.msra.mxu0 %v239
        %289 = vmatprep.subr.mxu0 0.0
        %290 = vmatpush1.msra.mxu0 %v240
        %291 = vmatprep.subr.mxu0 0.0
        %292 = vmatpush1.msra.mxu0 %v241
        %293 = vmatprep.subr.mxu0 0.0
        %294 = vmatpush1.msra.mxu0 %v242
        %295 = vmatprep.subr.mxu0 0.0
        %296 = vmatpush1.msra.mxu0 %v243
        %297 = vmatprep.subr.mxu0 0.0
        %298 = vmatpush1.msra.mxu0 %v244
        %299 = vmatprep.subr.mxu0 0.0
        %300 = vmatpush1.msra.mxu0 %v245
        %301 = vmatprep.subr.mxu0 0.0
        %302 = vmatpush1.msra.mxu0 %v246
        %303 = vmatprep.subr.mxu0 0.0
        %304 = vmatpush1.msra.mxu0 %v247
        %305 = vmatprep.subr.mxu0 0.0
        %306 = vmatpush1.msra.mxu0 %v248
        %307 = vmatprep.subr.mxu0 0.0
        %308 = vmatpush1.msra.mxu0 %v249
        %309 = vmatprep.subr.mxu0 0.0
        %310 = vmatpush1.msra.mxu0 %v250
        %311 = vmatprep.subr.mxu0 0.0
        %312 = vmatpush1.msra.mxu0 %v251
        %313 = vmatprep.subr.mxu0 0.0
        %314 = vmatpush1.msra.mxu0 %v252
        %315 = vmatprep.subr.mxu0 0.0
        %316 = vmatpush1.msra.mxu0 %v253
        %317 = vmatprep.subr.mxu0 0.0
        %318 = vmatpush1.msra.mxu0 %v254
        %319 = vmatprep.mubr.f32.mxu0 %v220
        %320 = vmatmul.mubr.f32.gmra.mrb[0].mxu0 %v219
        %v321 = vpop.f32.mrb[0].mxu0
        %v322 = vadd.f32 0.0, %v321
        %v323 = vpop.f32.mrb[0].mxu0
        %324 = vmatprep.mubr.f32.mxu0 %v222
        %325 = vmatmul.mubr.f32.gmra.mrb[0].mxu0 %v221
        %v326 = vpop.f32.mrb[0].mxu0
        %v327 = vadd.f32 0.0, %v326
        %v328 = vpop.f32.mrb[0].mxu0
        %329 = vdwg.mxu0
        %330 = vst [vmem:[%s214] sm:$0xff] %v322
        %331 = vst [vmem:[%s214 + $0x8] sm:$0xff] %v327
        %s332 = sand.u32 %s105, 1
        %s333 = scalar_lea.sflag [#allocation4], %s332
        %s334 = sand.u32 %s105, 1
        %s335 = smul.addr %s334, 16
        %s336 = scalar_lea.vmem [#allocation7], %s335
        // Predicated region
        $region37: #{tpu_custom_call.1} parent=27 // pred_check
          %p337 = pneg %p115
        $region38: #{tpu_custom_call.1} parent=27 // pred_check_branch
          %339 = sbr.rel (%p337) target = $region40
        $region39: #{tpu_custom_call.1} parent=27 // pred_region
          %s340 = smul.u32 2, %s25
          %s342 = ssub.s32 256, 256
          %343 = vsyncadd %s333, %s342
          %s344 = smul.addr %s340, 2
          %s345 = sadd.s32 %s26, %s344
          %s346 = smul.addr %s345, 128
          %s347 = scalar_lea.hbm %s2, %s346
          %s348 = sshll.u32 %s336, 4
          %s349 = int_to_ptr.vmem [resolvable:$true] %s348
          %354 = dma.vmem_to_hbm [thread:$0]  %s349, 256, %s347, %s333, 128, 256, 8
        $region40: #{tpu_custom_call.1} parent=27 // pred_fallthru
          _
      $region28: #{tpu_custom_call.1} parent=5 // pred_fallthru
        _
      %p355 = scmp.le.s32.totalorder 2, %s15
      // Predicated region
      $region41: #{tpu_custom_call.1} parent=5 // pred_check
        %p356 = pneg %p355
      $region42: #{tpu_custom_call.1} parent=5 // pred_check_branch
        %358 = sbr.rel (%p356) target = $region44
      $region43: #{tpu_custom_call.1} parent=5 // pred_region
        %s359 = ssub.s32 %s15, 2
        // Predicated region
        $region45: #{tpu_custom_call.1} parent=43 // pred_check
          %p360 = pneg %p121
        $region46: #{tpu_custom_call.1} parent=43 // pred_check_branch
          %362 = sbr.rel (%p360) target = $region48
        $region47: #{tpu_custom_call.1} parent=43 // pred_region
          %s363 = sand.u32 %s106, 1
          %s364 = scalar_lea.sflag [#allocation4], %s363
          %s365 = sand.u32 %s106, 1
          %s366 = smul.addr %s365, 16
          %s367 = scalar_lea.vmem [#allocation7], %s366
          %368 = dma.done %s364, 256
        $region48: #{tpu_custom_call.1} parent=43 // pred_fallthru
          _
      $region44: #{tpu_custom_call.1} parent=5 // pred_fallthru
        _
    $region6: #{tpu_custom_call.1} parent=1 // loop_footer
      %s19 = sadd.s32 1, %s15
    $region7: #{tpu_custom_call.1} parent=1 // loop_footer_branch
      %14 = sbr.rel target = $region3
    $region8: #{tpu_custom_call.1} parent=1 // loop_exit
      _
    %369 = vsyncpa [#allocation3], 1
    %s370 = scalar_lea.sflag [#allocation3], 1
    %371 = vsyncpa %s370, 1
    %372 = vsyncpa [#allocation6], 1
    %s373 = scalar_lea.sflag [#allocation6], 1
    %374 = vsyncpa %s373, 1
    %375 = vsyncpa [#allocation4], 1
    %s376 = scalar_lea.sflag [#allocation4], 1
    %377 = vsyncpa %s376, 1

</llo_original>
